<compile_context>
chip_gen: v7x
topology: tpu7x:2x2x1
jax: 0.10.0
libtpu: 0.0.40
codegen_flags: <defaults>
</compile_context>

<pallas_src>
import math
from itertools import combinations

import numpy as np
import jax
import jax.numpy as jnp
from jax.experimental import pallas as pl
from jax.experimental.pallas import tpu as pltpu


# ---------------------------------------------------------------------------
# Deterministic construction of the passage matrix (plain numpy "glue")
# ---------------------------------------------------------------------------
def map_RBS(n, k):
    """Maps each k-tuple of qubit positions (lexicographic order) to its basis index."""
    return {basis: idx for idx, basis in enumerate(combinations(range(n), k))}


def map_RBS_I2_3D_bottom_channel(I, J):
    """Maps (line, I+column, 2I+channel) -> flattened image index (channel-first)."""
    mapping = {}
    for channel in range(J):
        for line in range(I):
            for column in range(I):
                mapping[(line, I + column, 2 * I + channel)] = (
                    channel * I * I + line * I + column
                )
    return mapping


def passage_matrix_I_to_HW_3D(I, J, k):
    """Equivalent of Passage_matrix_I_to_HW_3D, returned as float32 jnp array."""
    n_out = math.comb(I + I + J, k)
    P = np.zeros((n_out, I * I * J), dtype=np.float32)
    mapping_input = map_RBS_I2_3D_bottom_channel(I, J)
    mapping_output = map_RBS(I + I + J, k)
    for line in range(I):
        for column in range(I):
            for channel in range(J):
                key = (line, I + column, 2 * I + channel)
                P[mapping_output[key], mapping_input[key]] = 1.0
    return jnp.asarray(P)


# ---------------------------------------------------------------------------
# Pallas kernel: per grid step, TB batch elements:  y[b] = P @ (x[b] @ P.T)
# ---------------------------------------------------------------------------
def _round_up(v, m):
    return ((v + m - 1) // m) * m


def _make_kernel(tb, d_pad, n_out, n_pad):
    def kernel(p_ref, pt_ref, x_ref, o_ref, t_ref):
        # p_ref : (n_out, d_pad)        passage matrix (resident)
        # pt_ref: (d_pad, n_pad)        its transpose, lane-padded to 128 (resident)
        # x_ref : (tb * d_pad, d_pad)   TB stacked density matrices
        # o_ref : (tb, n_out, n_out)    final output layout (no wrapper slice)
        # t_ref : (tb * d_pad, n_pad)   VMEM scratch for the intermediate x[b] @ P.T
        #
        # First matmul batched over the whole block: M = tb*d_pad (large),
        # K = d_pad, N = n_pad = 128 -> unmasked stores, good MXU occupancy.
        t_ref[...] = jnp.dot(
            x_ref[...], pt_ref[...], preferred_element_type=jnp.float32
        )

        # Second matmul per batch element. P loaded ONCE (hoisted out of the loop).
        p = p_ref[...]

        def body(b, carry):
            off = pl.multiple_of(b * d_pad, d_pad)
            t_b = t_ref[pl.ds(off, d_pad), :]          # (d_pad, n_pad)
            res = jnp.dot(p, t_b, preferred_element_type=jnp.float32)  # (n_out, n_pad)
            o_ref[b] = res[:, :n_out]                  # trim padded lanes at the store
            return carry

        jax.lax.fori_loop(0, tb, body, 0, unroll=min(tb, 4))

    return kernel


def _choose_tb(batch, cap):
    """Pick a batch tile: prefer a divisor of batch (no batch padding)."""
    cap = max(1, min(cap, batch))
    best_div = 1
    for t in range(cap, 0, -1):
        if batch % t == 0:
            best_div = t
            break
    if best_div >= max(1, cap // 2):
        return best_div, False      # exact divisor close enough to the cap
    return cap, True                # fall back to padding the batch


def _basis_change_real(P, x, *, tb_max=128, vmem_budget_bytes=24 << 20):
    """y[b] = P @ x[b] @ P.T for real float inputs."""
    batch, d_in, _ = x.shape
    n_out = P.shape[0]

    d_pad = _round_up(d_in, 8)      # sublane-aligned image dim (32 -> 32)
    n_pad = _round_up(n_out, 128)   # lane-padded intermediate width (120 -> 128)

    # VMEM model (f32, last dim lane-padded to 128 inside VMEM):
    per_elem = (
        2 * d_pad * 128     # x block, double buffered
        + 2 * n_out * 128   # output block, double buffered
        + d_pad * 128       # intermediate scratch (single buffer)
    ) * 4
    fixed = 2 * (n_out * 128 + d_pad * 128) * 4   # P and P.T blocks (double buffered)

    cap = max(1, min(tb_max, (vmem_budget_bytes - fixed) // per_elem))
    if batch >= 8:
        # Keep >= 4 grid steps so v7x megacore and the BlockSpec pipeline have work.
        cap = min(cap, max(1, batch // 4))
    tb, need_pad = _choose_tb(batch, cap)
    padded_batch = _round_up(batch, tb) if need_pad else batch

    # Pad P (zero rows/cols are numerically inert).
    P32 = P.astype(jnp.float32)
    P_rows = jnp.zeros((n_out, d_pad), jnp.float32).at[:, :d_in].set(P32)
    Pt_pad = jnp.zeros((d_pad, n_pad), jnp.float32).at[:d_in, :n_out].set(P32.T)

    xf = x.astype(jnp.float32)
    if padded_batch != batch or d_pad != d_in:
        x_p = jnp.zeros((padded_batch, d_pad, d_pad), jnp.float32)
        x_p = x_p.at[:batch, :d_in, :d_in].set(xf)
    else:
        x_p = xf
    # Flatten batch into the M dimension for the first matmul (free XLA reshape).
    x2 = x_p.reshape(padded_batch * d_pad, d_pad)

    grid = (padded_batch // tb,)
    kernel = _make_kernel(tb, d_pad, n_out, n_pad)

    # Explicit scoped-VMEM limit sized to the real footprint (v7x has only 64 MiB).
    vmem_limit = int(min(fixed + tb * per_elem + (4 << 20), 48 << 20))

    cost = pl.CostEstimate(
        flops=int(2 * padded_batch * (d_pad * d_pad * n_pad + n_out * d_pad * n_pad)),
        transcendentals=0,
        bytes_accessed=int(
            4 * (padded_batch * d_pad * d_pad
                 + padded_batch * n_out * n_out
                 + n_out * d_pad + d_pad * n_pad)
        ),
    )

    y = pl.pallas_call(
        kernel,
        out_shape=jax.ShapeDtypeStruct((padded_batch, n_out, n_out), jnp.float32),
        grid_spec=pltpu.PrefetchScalarGridSpec(
            num_scalar_prefetch=0,
            grid=grid,
            in_specs=[
                pl.BlockSpec((n_out, d_pad), lambda i: (0, 0)),        # P (resident)
                pl.BlockSpec((d_pad, n_pad), lambda i: (0, 0)),        # P.T (resident)
                pl.BlockSpec((tb * d_pad, d_pad), lambda i: (i, 0)),   # TB stacked x[b]
            ],
            out_specs=pl.BlockSpec((tb, n_out, n_out), lambda i: (i, 0, 0)),
            scratch_shapes=[pltpu.VMEM((tb * d_pad, n_pad), jnp.float32)],
        ),
        compiler_params=pltpu.CompilerParams(
            dimension_semantics=("parallel",),
            vmem_limit_bytes=vmem_limit,
        ),
        cost_estimate=cost,
    )(P_rows, Pt_pad, x2)

    # Only the batch dim may need trimming (contiguous slice; usually a no-op
    # because tb is chosen as a divisor of batch).
    return y[:batch] if padded_batch != batch else y


def basis_change_I_to_HW_density_3D(P, x, **kwargs):
    """Applies y[b] = P @ x[b] @ P.T. Handles real or complex density operators."""
    if jnp.iscomplexobj(x):
        # P is real: apply the (linear) map to real and imag parts in one kernel call
        # by stacking them along the batch axis.
        batch = x.shape[0]
        x_ri = jnp.concatenate([jnp.real(x), jnp.imag(x)], axis=0)
        y_ri = _basis_change_real(P, x_ri, **kwargs)
        return jax.lax.complex(y_ri[:batch], y_ri[batch:])
    return _basis_change_real(P, x, **kwargs)


# ---------------------------------------------------------------------------
if __name__ == "__main__":
    # Small, module-consistent shapes: I=4 (image side), J=2 (channels), k=3 (HW).
    I, J, k = 4, 2, 3
    batch = 2
    d_in = I * I * J                      # 32
    n_out = math.comb(I + I + J, k)       # binom(10, 3) = 120

    P = passage_matrix_I_to_HW_3D(I, J, k)

    key = jax.random.PRNGKey(0)
    x = jax.random.normal(key, (batch, d_in, d_in), dtype=jnp.float32)

    y = basis_change_I_to_HW_density_3D(P, x)
    y = jax.block_until_ready(y)

    # Reference check (pure JAX) of P @ x @ P.T
    ref = jnp.einsum("od,bde,fe->bof", P, x, P)
    assert y.shape == (batch, n_out, n_out)
    assert jnp.allclose(y, ref, atol=1e-5, rtol=1e-5)

    print("KERNEL_OK")
</pallas_src>

<mosaic_0001>
module attributes {stable_mosaic.version = 11 : i64} {
  func.func @kernel(%arg0: i32, %arg1: memref<120x32xf32, #tpu.memory_space<vmem>>, %arg2: memref<32x128xf32, #tpu.memory_space<vmem>>, %arg3: memref<64x32xf32, #tpu.memory_space<vmem>>, %arg4: memref<2x120x120xf32, #tpu.memory_space<vmem>>, %arg5: memref<64x128xf32, #tpu.memory_space<vmem>>) attributes {dimension_semantics = [#tpu.dimension_semantics<parallel>], iteration_bounds = array<i64: 1>, scalar_prefetch = 0 : i64, scratch_operands = 1 : i64, tpu.core_type = #tpu.core_type<tc>, window_params = [{pipeline_mode = #tpu.pipeline_mode<synchronous>, transform_indices = @transform_0, window_bounds = array<i64: 120, 32>}, {pipeline_mode = #tpu.pipeline_mode<synchronous>, transform_indices = @transform_1, window_bounds = array<i64: 32, 128>}, {transform_indices = @transform_2, window_bounds = array<i64: 64, 32>}, {transform_indices = @transform_3, window_bounds = array<i64: 2, 120, 120>}]} {
    %c0 = arith.constant 0 : index
    %c0_0 = arith.constant 0 : index
    %0 = vector.load %arg3[%c0, %c0_0] : memref<64x32xf32, #tpu.memory_space<vmem>>, vector<64x32xf32>
    %c0_1 = arith.constant 0 : index
    %c0_2 = arith.constant 0 : index
    %1 = vector.load %arg2[%c0_1, %c0_2] : memref<32x128xf32, #tpu.memory_space<vmem>>, vector<32x128xf32>
    %cst = arith.constant dense<0.000000e+00> : vector<64x128xf32>
    %2 = tpu.matmul %0, %1, %cst {dimension_numbers = #tpu.dot_dimension_numbers<[1], [0], [0], [1], [0, 0, 1, 1], [], []>} : vector<64x32xf32>, vector<32x128xf32>, vector<64x128xf32> -> vector<64x128xf32>
    %c0_3 = arith.constant 0 : index
    %c0_4 = arith.constant 0 : index
    %3 = vector.load %arg5[%c0_3, %c0_4] : memref<64x128xf32, #tpu.memory_space<vmem>>, vector<64x128xf32>
    tpu.vector_store %arg5[%c0_3, %c0_4], %2 {strides = array<i32>} : memref<64x128xf32, #tpu.memory_space<vmem>>, vector<64x128xf32>,
    %c0_5 = arith.constant 0 : index
    %c0_6 = arith.constant 0 : index
    %4 = vector.load %arg1[%c0_5, %c0_6] : memref<120x32xf32, #tpu.memory_space<vmem>>, vector<120x32xf32>
    %c0_i32 = arith.constant 0 : i32
    %c32_i32 = arith.constant 32 : i32
    %5 = arith.muli %c0_i32, %c32_i32 : i32
    %6 = tpu.assume_multiple %5, 32 : i32
    %7 = arith.index_cast %6 : i32 to index
    %c0_7 = arith.constant 0 : index
    %8 = vector.load %arg5[%7, %c0_7] : memref<64x128xf32, #tpu.memory_space<vmem>>, vector<32x128xf32>
    %cst_8 = arith.constant dense<0.000000e+00> : vector<120x128xf32>
    %9 = tpu.matmul %4, %8, %cst_8 {dimension_numbers = #tpu.dot_dimension_numbers<[1], [0], [0], [1], [0, 0, 1, 1], [], []>} : vector<120x32xf32>, vector<32x128xf32>, vector<120x128xf32> -> vector<120x128xf32>
    %10 = vector.extract_strided_slice %9 {offsets = [0, 0], sizes = [120, 120], strides = [1, 1]} : vector<120x128xf32> to vector<120x120xf32>
    %11 = arith.index_cast %c0_i32 : i32 to index
    %c0_9 = arith.constant 0 : index
    %c0_10 = arith.constant 0 : index
    %12 = vector.load %arg4[%11, %c0_9, %c0_10] : memref<2x120x120xf32, #tpu.memory_space<vmem>>, vector<1x120x120xf32>
    %13 = vector.shape_cast %12 : vector<1x120x120xf32> to vector<120x120xf32>
    %14 = vector.shape_cast %10 : vector<120x120xf32> to vector<1x120x120xf32>
    tpu.vector_store %arg4[%11, %c0_9, %c0_10], %14 {strides = array<i32>} : memref<2x120x120xf32, #tpu.memory_space<vmem>>, vector<1x120x120xf32>,
    %c1_i32 = arith.constant 1 : i32
    %c32_i32_11 = arith.constant 32 : i32
    %15 = arith.muli %c1_i32, %c32_i32_11 : i32
    %16 = tpu.assume_multiple %15, 32 : i32
    %17 = arith.index_cast %16 : i32 to index
    %c0_12 = arith.constant 0 : index
    %18 = vector.load %arg5[%17, %c0_12] : memref<64x128xf32, #tpu.memory_space<vmem>>, vector<32x128xf32>
    %cst_13 = arith.constant dense<0.000000e+00> : vector<120x128xf32>
    %19 = tpu.matmul %4, %18, %cst_13 {dimension_numbers = #tpu.dot_dimension_numbers<[1], [0], [0], [1], [0, 0, 1, 1], [], []>} : vector<120x32xf32>, vector<32x128xf32>, vector<120x128xf32> -> vector<120x128xf32>
    %20 = vector.extract_strided_slice %19 {offsets = [0, 0], sizes = [120, 120], strides = [1, 1]} : vector<120x128xf32> to vector<120x120xf32>
    %21 = arith.index_cast %c1_i32 : i32 to index
    %c0_14 = arith.constant 0 : index
    %c0_15 = arith.constant 0 : index
    %22 = vector.load %arg4[%21, %c0_14, %c0_15] : memref<2x120x120xf32, #tpu.memory_space<vmem>>, vector<1x120x120xf32>
    %23 = vector.shape_cast %22 : vector<1x120x120xf32> to vector<120x120xf32>
    %24 = vector.shape_cast %20 : vector<120x120xf32> to vector<1x120x120xf32>
    tpu.vector_store %arg4[%21, %c0_14, %c0_15], %24 {strides = array<i32>} : memref<2x120x120xf32, #tpu.memory_space<vmem>>, vector<1x120x120xf32>,
    %c2_i32 = arith.constant 2 : i32
    return
  }
  func.func @transform_0(%arg0: i32) -> (i32, i32) {
    %c0_i32 = arith.constant 0 : i32
    %c0_i32_0 = arith.constant 0 : i32
    %c0_i32_1 = arith.constant 0 : i32
    return %c0_i32, %c0_i32_0 : i32, i32
  }
  func.func @transform_1(%arg0: i32) -> (i32, i32) {
    %c0_i32 = arith.constant 0 : i32
    %c0_i32_0 = arith.constant 0 : i32
    %c0_i32_1 = arith.constant 0 : i32
    return %c0_i32, %c0_i32_0 : i32, i32
  }
  func.func @transform_2(%arg0: i32) -> (i32, i32) {
    %c0_i32 = arith.constant 0 : i32
    %c0_i32_0 = arith.constant 0 : i32
    return %arg0, %c0_i32 : i32, i32
  }
  func.func @transform_3(%arg0: i32) -> (i32, i32, i32) {
    %c0_i32 = arith.constant 0 : i32
    %c0_i32_0 = arith.constant 0 : i32
    %c0_i32_1 = arith.constant 0 : i32
    return %arg0, %c0_i32, %c0_i32_0 : i32, i32, i32
  }
}

</mosaic_0001>

<llo_original>
// kernel: tpu_custom_call.1
$region0: #{tpu_custom_call.1}
  #allocation0 [shape = 'u32[]', space=smem, size = 0x4, offset = 0x4, fixed_abs, tag = 'smem constant byte address 0x4 - core index']
  #allocation1 [shape = 'u32[144,128]{1,0:T(1,128)}', space=vmem, size = 0x12000, scoped, tag = 'internal scratch']
  #allocation2 [shape = 'f32[64,128]{1,0:T(8,128)}', space=vmem, size = 0x8000, scoped, tag = 'scratch operand']
  %s0 = inlined_call_operand.vmem [shape: f32[120,32], index: 0, kind: input, shape index: {}]
  %s1 = inlined_call_operand.vmem [shape: f32[32,128], index: 1, kind: input, shape index: {}]
  %s2 = inlined_call_operand.vmem [shape: f32[64,32], index: 2, kind: input, shape index: {}]
  %s3 = inlined_call_operand.hbm [shape: f32[2,120,120], index: 3, kind: output, shape index: {}]
  %s4 = sld [smem:[#allocation0]]
  $region22: #{tpu_custom_call.1} parent=0
    _
  %s6 = ssub.s32 1, %s4
  %s7 = scalar_select 0, %s6, %s4
  $region1: #{tpu_custom_call.1} parent=0
    #allocation3 [shape = 'u8[122880]{0}', space=vmem, size = 0x1e000, scoped, tag = 'output window, operand 0, single buffered']
    #allocation4 [shape = 's32[1]{0}', space=sflag, size = 0x4, scoped, tag = 'scoped memory for tpu_custom_call.1']
    %8 = vsyncpa [#allocation4], 0
    // Predicated region
    $region2: #{tpu_custom_call.1} parent=1 // pred_check
      _
    $region3: #{tpu_custom_call.1} parent=1 // pred_check_branch
      %10 = sbr.rel (0) target = $region5
    $region4: #{tpu_custom_call.1} parent=1 // pred_region
      _
    $region5: #{tpu_custom_call.1} parent=1 // pred_fallthru
      _
    // Predicated region
    $region6: #{tpu_custom_call.1} parent=1 // pred_check
      _
    $region7: #{tpu_custom_call.1} parent=1 // pred_check_branch
      %12 = sbr.rel (0) target = $region9
    $region8: #{tpu_custom_call.1} parent=1 // pred_region
      _
    $region9: #{tpu_custom_call.1} parent=1 // pred_fallthru
      _
    // Predicated region
    $region10: #{tpu_custom_call.1} parent=1 // pred_check
      _
    $region11: #{tpu_custom_call.1} parent=1 // pred_check_branch
      %14 = sbr.rel (0) target = $region13
    $region12: #{tpu_custom_call.1} parent=1 // pred_region
      _
    $region13: #{tpu_custom_call.1} parent=1 // pred_fallthru
      _
    %v15 = vld [vmem:[%s2] sm:$0xff]
    %v16 = vld [vmem:[%s2 + $0x8] sm:$0xff]
    %v17 = vld [vmem:[%s2 + $0x10] sm:$0xff]
    %v18 = vld [vmem:[%s2 + $0x18] sm:$0xff]
    %v19 = vld [vmem:[%s2 + $0x20] sm:$0xff]
    %v20 = vld [vmem:[%s2 + $0x28] sm:$0xff]
    %v21 = vld [vmem:[%s2 + $0x30] sm:$0xff]
    %v22 = vld [vmem:[%s2 + $0x38] sm:$0xff]
    %v23 = vld [vmem:[%s1] sm:$0xff]
    %v24 = vld [vmem:[%s1 + $0x8] sm:$0xff]
    %v25 = vld [vmem:[%s1 + $0x10] sm:$0xff]
    %v26 = vld [vmem:[%s1 + $0x18] sm:$0xff]
    %vm27 = vcmask 261120
    %v29 = vsel %vm27, %v15, 0
    %v32 = vsel %vm27, %v16, 0
    %v35 = vsel %vm27, %v17, 0
    %v38 = vsel %vm27, %v18, 0
    %v41 = vsel %vm27, %v19, 0
    %v44 = vsel %vm27, %v20, 0
    %v47 = vsel %vm27, %v21, 0
    %v50 = vsel %vm27, %v22, 0
    %52 = vmatprep.subr.mxu0 0.0
    %53 = vmatpush1.msra.mxu0 %v23
    %54 = vmatprep.subr.mxu0 0.0
    %55 = vmatpush1.msra.mxu0 %v24
    %56 = vmatprep.subr.mxu0 0.0
    %57 = vmatpush1.msra.mxu0 %v25
    %58 = vmatprep.subr.mxu0 0.0
    %59 = vmatpush1.msra.mxu0 %v26
    %60 = vmatprep.subr.mxu0 0.0
    %61 = vmatpush1.msra.mxu0 0.0
    %62 = vmatprep.subr.mxu0 0.0
    %63 = vmatpush1.msra.mxu0 0.0
    %64 = vmatprep.subr.mxu0 0.0
    %65 = vmatpush1.msra.mxu0 0.0
    %66 = vmatprep.subr.mxu0 0.0
    %67 = vmatpush1.msra.mxu0 0.0
    %68 = vmatprep.subr.mxu0 0.0
    %69 = vmatpush1.msra.mxu0 0.0
    %70 = vmatprep.subr.mxu0 0.0
    %71 = vmatpush1.msra.mxu0 0.0
    %72 = vmatprep.subr.mxu0 0.0
    %73 = vmatpush1.msra.mxu0 0.0
    %74 = vmatprep.subr.mxu0 0.0
    %75 = vmatpush1.msra.mxu0 0.0
    %76 = vmatprep.subr.mxu0 0.0
    %77 = vmatpush1.msra.mxu0 0.0
    %78 = vmatprep.subr.mxu0 0.0
    %79 = vmatpush1.msra.mxu0 0.0
    %80 = vmatprep.subr.mxu0 0.0
    %81 = vmatpush1.msra.mxu0 0.0
    %82 = vmatprep.subr.mxu0 0.0
    %83 = vmatpush1.msra.mxu0 0.0
    %84 = vmatprep.subr.mxu0 0.0
    %85 = vmatpush1.msra.mxu0 0.0
    %86 = vmatprep.subr.mxu0 0.0
    %87 = vmatpush1.msra.mxu0 0.0
    %88 = vmatprep.subr.mxu0 0.0
    %89 = vmatpush1.msra.mxu0 0.0
    %90 = vmatprep.subr.mxu0 0.0
    %91 = vmatpush1.msra.mxu0 0.0
    %92 = vmatprep.subr.mxu0 0.0
    %93 = vmatpush1.msra.mxu0 0.0
    %94 = vmatprep.subr.mxu0 0.0
    %95 = vmatpush1.msra.mxu0 0.0
    %96 = vmatprep.subr.mxu0 0.0
    %97 = vmatpush1.msra.mxu0 0.0
    %98 = vmatprep.subr.mxu0 0.0
    %99 = vmatpush1.msra.mxu0 0.0
    %100 = vmatprep.subr.mxu0 0.0
    %101 = vmatpush1.msra.mxu0 0.0
    %102 = vmatprep.subr.mxu0 0.0
    %103 = vmatpush1.msra.mxu0 0.0
    %104 = vmatprep.subr.mxu0 0.0
    %105 = vmatpush1.msra.mxu0 0.0
    %106 = vmatprep.subr.mxu0 0.0
    %107 = vmatpush1.msra.mxu0 0.0
    %108 = vmatprep.subr.mxu0 0.0
    %109 = vmatpush1.msra.mxu0 0.0
    %110 = vmatprep.subr.mxu0 0.0
    %111 = vmatpush1.msra.mxu0 0.0
    %112 = vmatprep.subr.mxu0 0.0
    %113 = vmatpush1.msra.mxu0 0.0
    %114 = vmatprep.subr.mxu0 0.0
    %115 = vmatpush1.msra.mxu0 0.0
    %116 = vmatprep.mubr.f32.mxu0 0.0
    %117 = vmatmul.mubr.f32.gmra.mrb[0].mxu0 %v29
    %v118 = vpop.f32.mrb[0].mxu0
    %v119 = vadd.f32 0.0, %v118
    %v120 = vpop.f32.mrb[0].mxu0
    %121 = vmatprep.mubr.f32.mxu0 0.0
    %122 = vmatmul.mubr.f32.gmra.mrb[0].mxu0 %v32
    %v123 = vpop.f32.mrb[0].mxu0
    %v124 = vadd.f32 0.0, %v123
    %v125 = vpop.f32.mrb[0].mxu0
    %126 = vmatprep.mubr.f32.mxu0 0.0
    %127 = vmatmul.mubr.f32.gmra.mrb[0].mxu0 %v35
    %v128 = vpop.f32.mrb[0].mxu0
    %v129 = vadd.f32 0.0, %v128
    %v130 = vpop.f32.mrb[0].mxu0
    %131 = vmatprep.mubr.f32.mxu0 0.0
    %132 = vmatmul.mubr.f32.gmra.mrb[0].mxu0 %v38
    %v133 = vpop.f32.mrb[0].mxu0
    %v134 = vadd.f32 0.0, %v133
    %v135 = vpop.f32.mrb[0].mxu0
    %136 = vmatprep.mubr.f32.mxu0 0.0
    %137 = vmatmul.mubr.f32.gmra.mrb[0].mxu0 %v41
    %v138 = vpop.f32.mrb[0].mxu0
    %v139 = vadd.f32 0.0, %v138
    %v140 = vpop.f32.mrb[0].mxu0
    %141 = vmatprep.mubr.f32.mxu0 0.0
    %142 = vmatmul.mubr.f32.gmra.mrb[0].mxu0 %v44
    %v143 = vpop.f32.mrb[0].mxu0
    %v144 = vadd.f32 0.0, %v143
    %v145 = vpop.f32.mrb[0].mxu0
    %146 = vmatprep.mubr.f32.mxu0 0.0
    %147 = vmatmul.mubr.f32.gmra.mrb[0].mxu0 %v47
    %v148 = vpop.f32.mrb[0].mxu0
    %v149 = vadd.f32 0.0, %v148
    %v150 = vpop.f32.mrb[0].mxu0
    %151 = vmatprep.mubr.f32.mxu0 0.0
    %152 = vmatmul.mubr.f32.gmra.mrb[0].mxu0 %v50
    %v153 = vpop.f32.mrb[0].mxu0
    %v154 = vadd.f32 0.0, %v153
    %v155 = vpop.f32.mrb[0].mxu0
    %156 = vdwg.mxu0
    %157 = vst [vmem:[#allocation2] sm:$0xff] %v119
    %158 = vst [vmem:[#allocation2 + $0x8] sm:$0xff] %v124
    %159 = vst [vmem:[#allocation2 + $0x10] sm:$0xff] %v129
    %160 = vst [vmem:[#allocation2 + $0x18] sm:$0xff] %v134
    %161 = vst [vmem:[#allocation2 + $0x20] sm:$0xff] %v139
    %162 = vst [vmem:[#allocation2 + $0x28] sm:$0xff] %v144
    %163 = vst [vmem:[#allocation2 + $0x30] sm:$0xff] %v149
    %164 = vst [vmem:[#allocation2 + $0x38] sm:$0xff] %v154
    %v165 = vld [vmem:[%s0] sm:$0xff]
    %v166 = vld [vmem:[%s0 + $0x8] sm:$0xff]
    %v167 = vld [vmem:[%s0 + $0x10] sm:$0xff]
    %v168 = vld [vmem:[%s0 + $0x18] sm:$0xff]
    %v169 = vld [vmem:[%s0 + $0x20] sm:$0xff]
    %v170 = vld [vmem:[%s0 + $0x28] sm:$0xff]
    %v171 = vld [vmem:[%s0 + $0x30] sm:$0xff]
    %v172 = vld [vmem:[%s0 + $0x38] sm:$0xff]
    %v173 = vld [vmem:[%s0 + $0x40] sm:$0xff]
    %v174 = vld [vmem:[%s0 + $0x48] sm:$0xff]
    %v175 = vld [vmem:[%s0 + $0x50] sm:$0xff]
    %v176 = vld [vmem:[%s0 + $0x58] sm:$0xff]
    %v177 = vld [vmem:[%s0 + $0x60] sm:$0xff]
    %v178 = vld [vmem:[%s0 + $0x68] sm:$0xff]
    %v179 = vld [vmem:[%s0 + $0x70] sm:$0xff]
    %v180 = vld [vmem:[#allocation2] sm:$0xff]
    %v181 = vld [vmem:[#allocation2 + $0x8] sm:$0xff]
    %v182 = vld [vmem:[#allocation2 + $0x10] sm:$0xff]
    %v183 = vld [vmem:[#allocation2 + $0x18] sm:$0xff]
    %v185 = vsel %vm27, %v165, 0
    %v188 = vsel %vm27, %v166, 0
    %v191 = vsel %vm27, %v167, 0
    %v194 = vsel %vm27, %v168, 0
    %v197 = vsel %vm27, %v169, 0
    %v200 = vsel %vm27, %v170, 0
    %v203 = vsel %vm27, %v171, 0
    %v206 = vsel %vm27, %v172, 0
    %v209 = vsel %vm27, %v173, 0
    %v212 = vsel %vm27, %v174, 0
    %v215 = vsel %vm27, %v175, 0
    %v218 = vsel %vm27, %v176, 0
    %v221 = vsel %vm27, %v177, 0
    %v224 = vsel %vm27, %v178, 0
    %v227 = vsel %vm27, %v179, 0
    %229 = vmatprep.subr.mxu0 0.0
    %230 = vmatpush1.msra.mxu0 %v180
    %231 = vmatprep.subr.mxu0 0.0
    %232 = vmatpush1.msra.mxu0 %v181
    %233 = vmatprep.subr.mxu0 0.0
    %234 = vmatpush1.msra.mxu0 %v182
    %235 = vmatprep.subr.mxu0 0.0
    %236 = vmatpush1.msra.mxu0 %v183
    %237 = vmatprep.subr.mxu0 0.0
    %238 = vmatpush1.msra.mxu0 0.0
    %239 = vmatprep.subr.mxu0 0.0
    %240 = vmatpush1.msra.mxu0 0.0
    %241 = vmatprep.subr.mxu0 0.0
    %242 = vmatpush1.msra.mxu0 0.0
    %243 = vmatprep.subr.mxu0 0.0
    %244 = vmatpush1.msra.mxu0 0.0
    %245 = vmatprep.subr.mxu0 0.0
    %246 = vmatpush1.msra.mxu0 0.0
    %247 = vmatprep.subr.mxu0 0.0
    %248 = vmatpush1.msra.mxu0 0.0
    %249 = vmatprep.subr.mxu0 0.0
    %250 = vmatpush1.msra.mxu0 0.0
    %251 = vmatprep.subr.mxu0 0.0
    %252 = vmatpush1.msra.mxu0 0.0
    %253 = vmatprep.subr.mxu0 0.0
    %254 = vmatpush1.msra.mxu0 0.0
    %255 = vmatprep.subr.mxu0 0.0
    %256 = vmatpush1.msra.mxu0 0.0
    %257 = vmatprep.subr.mxu0 0.0
    %258 = vmatpush1.msra.mxu0 0.0
    %259 = vmatprep.subr.mxu0 0.0
    %260 = vmatpush1.msra.mxu0 0.0
    %261 = vmatprep.subr.mxu0 0.0
    %262 = vmatpush1.msra.mxu0 0.0
    %263 = vmatprep.subr.mxu0 0.0
    %264 = vmatpush1.msra.mxu0 0.0
    %265 = vmatprep.subr.mxu0 0.0
    %266 = vmatpush1.msra.mxu0 0.0
    %267 = vmatprep.subr.mxu0 0.0
    %268 = vmatpush1.msra.mxu0 0.0
    %269 = vmatprep.subr.mxu0 0.0
    %270 = vmatpush1.msra.mxu0 0.0
    %271 = vmatprep.subr.mxu0 0.0
    %272 = vmatpush1.msra.mxu0 0.0
    %273 = vmatprep.subr.mxu0 0.0
    %274 = vmatpush1.msra.mxu0 0.0
    %275 = vmatprep.subr.mxu0 0.0
    %276 = vmatpush1.msra.mxu0 0.0
    %277 = vmatprep.subr.mxu0 0.0
    %278 = vmatpush1.msra.mxu0 0.0
    %279 = vmatprep.subr.mxu0 0.0
    %280 = vmatpush1.msra.mxu0 0.0
    %281 = vmatprep.subr.mxu0 0.0
    %282 = vmatpush1.msra.mxu0 0.0
    %283 = vmatprep.subr.mxu0 0.0
    %284 = vmatpush1.msra.mxu0 0.0
    %285 = vmatprep.subr.mxu0 0.0
    %286 = vmatpush1.msra.mxu0 0.0
    %287 = vmatprep.subr.mxu0 0.0
    %288 = vmatpush1.msra.mxu0 0.0
    %289 = vmatprep.subr.mxu0 0.0
    %290 = vmatpush1.msra.mxu0 0.0
    %291 = vmatprep.subr.mxu0 0.0
    %292 = vmatpush1.msra.mxu0 0.0
    %293 = vmatprep.mubr.f32.mxu0 0.0
    %294 = vmatmul.mubr.f32.gmra.mrb[0].mxu0 %v185
    %v295 = vpop.f32.mrb[0].mxu0
    %v296 = vadd.f32 0.0, %v295
    %v297 = vpop.f32.mrb[0].mxu0
    %298 = vmatprep.mubr.f32.mxu0 0.0
    %299 = vmatmul.mubr.f32.gmra.mrb[0].mxu0 %v188
    %v300 = vpop.f32.mrb[0].mxu0
    %v301 = vadd.f32 0.0, %v300
    %v302 = vpop.f32.mrb[0].mxu0
    %303 = vmatprep.mubr.f32.mxu0 0.0
    %304 = vmatmul.mubr.f32.gmra.mrb[0].mxu0 %v191
    %v305 = vpop.f32.mrb[0].mxu0
    %v306 = vadd.f32 0.0, %v305
    %v307 = vpop.f32.mrb[0].mxu0
    %308 = vmatprep.mubr.f32.mxu0 0.0
    %309 = vmatmul.mubr.f32.gmra.mrb[0].mxu0 %v194
    %v310 = vpop.f32.mrb[0].mxu0
    %v311 = vadd.f32 0.0, %v310
    %v312 = vpop.f32.mrb[0].mxu0
    %313 = vmatprep.mubr.f32.mxu0 0.0
    %314 = vmatmul.mubr.f32.gmra.mrb[0].mxu0 %v197
    %v315 = vpop.f32.mrb[0].mxu0
    %v316 = vadd.f32 0.0, %v315
    %v317 = vpop.f32.mrb[0].mxu0
    %318 = vmatprep.mubr.f32.mxu0 0.0
    %319 = vmatmul.mubr.f32.gmra.mrb[0].mxu0 %v200
    %v320 = vpop.f32.mrb[0].mxu0
    %v321 = vadd.f32 0.0, %v320
    %v322 = vpop.f32.mrb[0].mxu0
    %323 = vmatprep.mubr.f32.mxu0 0.0
    %324 = vmatmul.mubr.f32.gmra.mrb[0].mxu0 %v203
    %v325 = vpop.f32.mrb[0].mxu0
    %v326 = vadd.f32 0.0, %v325
    %v327 = vpop.f32.mrb[0].mxu0
    %328 = vmatprep.mubr.f32.mxu0 0.0
    %329 = vmatmul.mubr.f32.gmra.mrb[0].mxu0 %v206
    %v330 = vpop.f32.mrb[0].mxu0
    %v331 = vadd.f32 0.0, %v330
    %v332 = vpop.f32.mrb[0].mxu0
    %333 = vmatprep.mubr.f32.mxu0 0.0
    %334 = vmatmul.mubr.f32.gmra.mrb[0].mxu0 %v209
    %v335 = vpop.f32.mrb[0].mxu0
    %v336 = vadd.f32 0.0, %v335
    %v337 = vpop.f32.mrb[0].mxu0
    %338 = vmatprep.mubr.f32.mxu0 0.0
    %339 = vmatmul.mubr.f32.gmra.mrb[0].mxu0 %v212
    %v340 = vpop.f32.mrb[0].mxu0
    %v341 = vadd.f32 0.0, %v340
    %v342 = vpop.f32.mrb[0].mxu0
    %343 = vmatprep.mubr.f32.mxu0 0.0
    %344 = vmatmul.mubr.f32.gmra.mrb[0].mxu0 %v215
    %v345 = vpop.f32.mrb[0].mxu0
    %v346 = vadd.f32 0.0, %v345
    %v347 = vpop.f32.mrb[0].mxu0
    %348 = vmatprep.mubr.f32.mxu0 0.0
    %349 = vmatmul.mubr.f32.gmra.mrb[0].mxu0 %v218
    %v350 = vpop.f32.mrb[0].mxu0
    %v351 = vadd.f32 0.0, %v350
    %v352 = vpop.f32.mrb[0].mxu0
    %353 = vmatprep.mubr.f32.mxu0 0.0
    %354 = vmatmul.mubr.f32.gmra.mrb[0].mxu0 %v221
    %v355 = vpop.f32.mrb[0].mxu0
    %v356 = vadd.f32 0.0, %v355
    %v357 = vpop.f32.mrb[0].mxu0
    %358 = vmatprep.mubr.f32.mxu0 0.0
    %359 = vmatmul.mubr.f32.gmra.mrb[0].mxu0 %v224
    %v360 = vpop.f32.mrb[0].mxu0
    %v361 = vadd.f32 0.0, %v360
    %v362 = vpop.f32.mrb[0].mxu0
    %363 = vmatprep.mubr.f32.mxu0 0.0
    %364 = vmatmul.mubr.f32.gmra.mrb[0].mxu0 %v227
    %v365 = vpop.f32.mrb[0].mxu0
    %v366 = vadd.f32 0.0, %v365
    %v367 = vpop.f32.mrb[0].mxu0
    %368 = vdwg.mxu0
    %vm369 = vcmask 982016
    %370 = vst.msk [vmem:[#allocation3] sm:$0xff] %vm369, %v296
    %371 = vst.msk [vmem:[#allocation3 + $0x8] sm:$0xff] %vm369, %v301
    %372 = vst.msk [vmem:[#allocation3 + $0x10] sm:$0xff] %vm369, %v306
    %373 = vst.msk [vmem:[#allocation3 + $0x18] sm:$0xff] %vm369, %v311
    %374 = vst.msk [vmem:[#allocation3 + $0x20] sm:$0xff] %vm369, %v316
    %375 = vst.msk [vmem:[#allocation3 + $0x28] sm:$0xff] %vm369, %v321
    %376 = vst.msk [vmem:[#allocation3 + $0x30] sm:$0xff] %vm369, %v326
    %377 = vst.msk [vmem:[#allocation3 + $0x38] sm:$0xff] %vm369, %v331
    %378 = vst.msk [vmem:[#allocation3 + $0x40] sm:$0xff] %vm369, %v336
    %379 = vst.msk [vmem:[#allocation3 + $0x48] sm:$0xff] %vm369, %v341
    %380 = vst.msk [vmem:[#allocation3 + $0x50] sm:$0xff] %vm369, %v346
    %381 = vst.msk [vmem:[#allocation3 + $0x58] sm:$0xff] %vm369, %v351
    %382 = vst.msk [vmem:[#allocation3 + $0x60] sm:$0xff] %vm369, %v356
    %383 = vst.msk [vmem:[#allocation3 + $0x68] sm:$0xff] %vm369, %v361
    %384 = vst.msk [vmem:[#allocation3 + $0x70] sm:$0xff] %vm369, %v366
    %s385 = scalar_lea.vmem [#allocation2], 32
    %v386 = vld [vmem:[%s385] sm:$0xff]
    %v387 = vld [vmem:[%s385 + $0x8] sm:$0xff]
    %v388 = vld [vmem:[%s385 + $0x10] sm:$0xff]
    %v389 = vld [vmem:[%s385 + $0x18] sm:$0xff]
    %390 = vmatprep.subr.mxu0 0.0
    %391 = vmatpush1.msra.mxu0 %v386
    %392 = vmatprep.subr.mxu0 0.0
    %393 = vmatpush1.msra.mxu0 %v387
    %394 = vmatprep.subr.mxu0 0.0
    %395 = vmatpush1.msra.mxu0 %v388
    %396 = vmatprep.subr.mxu0 0.0
    %397 = vmatpush1.msra.mxu0 %v389
    %398 = vmatprep.subr.mxu0 0.0
    %399 = vmatpush1.msra.mxu0 0.0
    %400 = vmatprep.subr.mxu0 0.0
    %401 = vmatpush1.msra.mxu0 0.0
    %402 = vmatprep.subr.mxu0 0.0
    %403 = vmatpush1.msra.mxu0 0.0
    %404 = vmatprep.subr.mxu0 0.0
    %405 = vmatpush1.msra.mxu0 0.0
    %406 = vmatprep.subr.mxu0 0.0
    %407 = vmatpush1.msra.mxu0 0.0
    %408 = vmatprep.subr.mxu0 0.0
    %409 = vmatpush1.msra.mxu0 0.0
    %410 = vmatprep.subr.mxu0 0.0
    %411 = vmatpush1.msra.mxu0 0.0
    %412 = vmatprep.subr.mxu0 0.0
    %413 = vmatpush1.msra.mxu0 0.0
    %414 = vmatprep.subr.mxu0 0.0
    %415 = vmatpush1.msra.mxu0 0.0
    %416 = vmatprep.subr.mxu0 0.0
    %417 = vmatpush1.msra.mxu0 0.0
    %418 = vmatprep.subr.mxu0 0.0
    %419 = vmatpush1.msra.mxu0 0.0
    %420 = vmatprep.subr.mxu0 0.0
    %421 = vmatpush1.msra.mxu0 0.0
    %422 = vmatprep.subr.mxu0 0.0
    %423 = vmatpush1.msra.mxu0 0.0
    %424 = vmatprep.subr.mxu0 0.0
    %425 = vmatpush1.msra.mxu0 0.0
    %426 = vmatprep.subr.mxu0 0.0
    %427 = vmatpush1.msra.mxu0 0.0
    %428 = vmatprep.subr.mxu0 0.0
    %429 = vmatpush1.msra.mxu0 0.0
    %430 = vmatprep.subr.mxu0 0.0
    %431 = vmatpush1.msra.mxu0 0.0
    %432 = vmatprep.subr.mxu0 0.0
    %433 = vmatpush1.msra.mxu0 0.0
    %434 = vmatprep.subr.mxu0 0.0
    %435 = vmatpush1.msra.mxu0 0.0
    %436 = vmatprep.subr.mxu0 0.0
    %437 = vmatpush1.msra.mxu0 0.0
    %438 = vmatprep.subr.mxu0 0.0
    %439 = vmatpush1.msra.mxu0 0.0
    %440 = vmatprep.subr.mxu0 0.0
    %441 = vmatpush1.msra.mxu0 0.0
    %442 = vmatprep.subr.mxu0 0.0
    %443 = vmatpush1.msra.mxu0 0.0
    %444 = vmatprep.subr.mxu0 0.0
    %445 = vmatpush1.msra.mxu0 0.0
    %446 = vmatprep.subr.mxu0 0.0
    %447 = vmatpush1.msra.mxu0 0.0
    %448 = vmatprep.subr.mxu0 0.0
    %449 = vmatpush1.msra.mxu0 0.0
    %450 = vmatprep.subr.mxu0 0.0
    %451 = vmatpush1.msra.mxu0 0.0
    %452 = vmatprep.subr.mxu0 0.0
    %453 = vmatpush1.msra.mxu0 0.0
    %454 = vmatprep.mubr.f32.mxu0 0.0
    %455 = vmatmul.mubr.f32.gmra.mrb[0].mxu0 %v185
    %v456 = vpop.f32.mrb[0].mxu0
    %v457 = vadd.f32 0.0, %v456
    %v458 = vpop.f32.mrb[0].mxu0
    %459 = vmatprep.mubr.f32.mxu0 0.0
    %460 = vmatmul.mubr.f32.gmra.mrb[0].mxu0 %v188
    %v461 = vpop.f32.mrb[0].mxu0
    %v462 = vadd.f32 0.0, %v461
    %v463 = vpop.f32.mrb[0].mxu0
    %464 = vmatprep.mubr.f32.mxu0 0.0
    %465 = vmatmul.mubr.f32.gmra.mrb[0].mxu0 %v191
    %v466 = vpop.f32.mrb[0].mxu0
    %v467 = vadd.f32 0.0, %v466
    %v468 = vpop.f32.mrb[0].mxu0
    %469 = vmatprep.mubr.f32.mxu0 0.0
    %470 = vmatmul.mubr.f32.gmra.mrb[0].mxu0 %v194
    %v471 = vpop.f32.mrb[0].mxu0
    %v472 = vadd.f32 0.0, %v471
    %v473 = vpop.f32.mrb[0].mxu0
    %474 = vmatprep.mubr.f32.mxu0 0.0
    %475 = vmatmul.mubr.f32.gmra.mrb[0].mxu0 %v197
    %v476 = vpop.f32.mrb[0].mxu0
    %v477 = vadd.f32 0.0, %v476
    %v478 = vpop.f32.mrb[0].mxu0
    %479 = vmatprep.mubr.f32.mxu0 0.0
    %480 = vmatmul.mubr.f32.gmra.mrb[0].mxu0 %v200
    %v481 = vpop.f32.mrb[0].mxu0
    %v482 = vadd.f32 0.0, %v481
    %v483 = vpop.f32.mrb[0].mxu0
    %484 = vmatprep.mubr.f32.mxu0 0.0
    %485 = vmatmul.mubr.f32.gmra.mrb[0].mxu0 %v203
    %v486 = vpop.f32.mrb[0].mxu0
    %v487 = vadd.f32 0.0, %v486
    %v488 = vpop.f32.mrb[0].mxu0
    %489 = vmatprep.mubr.f32.mxu0 0.0
    %490 = vmatmul.mubr.f32.gmra.mrb[0].mxu0 %v206
    %v491 = vpop.f32.mrb[0].mxu0
    %v492 = vadd.f32 0.0, %v491
    %v493 = vpop.f32.mrb[0].mxu0
    %494 = vmatprep.mubr.f32.mxu0 0.0
    %495 = vmatmul.mubr.f32.gmra.mrb[0].mxu0 %v209
    %v496 = vpop.f32.mrb[0].mxu0
    %v497 = vadd.f32 0.0, %v496
    %v498 = vpop.f32.mrb[0].mxu0
    %499 = vmatprep.mubr.f32.mxu0 0.0
    %500 = vmatmul.mubr.f32.gmra.mrb[0].mxu0 %v212
    %v501 = vpop.f32.mrb[0].mxu0
    %v502 = vadd.f32 0.0, %v501
    %v503 = vpop.f32.mrb[0].mxu0
    %504 = vmatprep.mubr.f32.mxu0 0.0
    %505 = vmatmul.mubr.f32.gmra.mrb[0].mxu0 %v215
    %v506 = vpop.f32.mrb[0].mxu0
    %v507 = vadd.f32 0.0, %v506
    %v508 = vpop.f32.mrb[0].mxu0
    %509 = vmatprep.mubr.f32.mxu0 0.0
    %510 = vmatmul.mubr.f32.gmra.mrb[0].mxu0 %v218
    %v511 = vpop.f32.mrb[0].mxu0
    %v512 = vadd.f32 0.0, %v511
    %v513 = vpop.f32.mrb[0].mxu0
    %514 = vmatprep.mubr.f32.mxu0 0.0
    %515 = vmatmul.mubr.f32.gmra.mrb[0].mxu0 %v221
    %v516 = vpop.f32.mrb[0].mxu0
    %v517 = vadd.f32 0.0, %v516
    %v518 = vpop.f32.mrb[0].mxu0
    %519 = vmatprep.mubr.f32.mxu0 0.0
    %520 = vmatmul.mubr.f32.gmra.mrb[0].mxu0 %v224
    %v521 = vpop.f32.mrb[0].mxu0
    %v522 = vadd.f32 0.0, %v521
    %v523 = vpop.f32.mrb[0].mxu0
    %524 = vmatprep.mubr.f32.mxu0 0.0
    %525 = vmatmul.mubr.f32.gmra.mrb[0].mxu0 %v227
    %v526 = vpop.f32.mrb[0].mxu0
    %v527 = vadd.f32 0.0, %v526
    %v528 = vpop.f32.mrb[0].mxu0
    %529 = vdwg.mxu0
    %s530 = scalar_lea.vmem [#allocation3], 120
    %531 = vst.msk [vmem:[%s530] sm:$0xff] %vm369, %v457
    %532 = vst.msk [vmem:[%s530 + $0x8] sm:$0xff] %vm369, %v462
    %533 = vst.msk [vmem:[%s530 + $0x10] sm:$0xff] %vm369, %v467
    %534 = vst.msk [vmem:[%s530 + $0x18] sm:$0xff] %vm369, %v472
    %535 = vst.msk [vmem:[%s530 + $0x20] sm:$0xff] %vm369, %v477
    %536 = vst.msk [vmem:[%s530 + $0x28] sm:$0xff] %vm369, %v482
    %537 = vst.msk [vmem:[%s530 + $0x30] sm:$0xff] %vm369, %v487
    %538 = vst.msk [vmem:[%s530 + $0x38] sm:$0xff] %vm369, %v492
    %539 = vst.msk [vmem:[%s530 + $0x40] sm:$0xff] %vm369, %v497
    %540 = vst.msk [vmem:[%s530 + $0x48] sm:$0xff] %vm369, %v502
    %541 = vst.msk [vmem:[%s530 + $0x50] sm:$0xff] %vm369, %v507
    %542 = vst.msk [vmem:[%s530 + $0x58] sm:$0xff] %vm369, %v512
    %543 = vst.msk [vmem:[%s530 + $0x60] sm:$0xff] %vm369, %v517
    %544 = vst.msk [vmem:[%s530 + $0x68] sm:$0xff] %vm369, %v522
    %545 = vst.msk [vmem:[%s530 + $0x70] sm:$0xff] %vm369, %v527
    // Predicated region
    $region14: #{tpu_custom_call.1} parent=1 // pred_check
      _
    $region15: #{tpu_custom_call.1} parent=1 // pred_check_branch
      %547 = sbr.rel (0) target = $region17
    $region16: #{tpu_custom_call.1} parent=1 // pred_region
      %s549 = ssub.s32 3840, 3840
      %550 = vsyncadd [#allocation4], %s549
      %s551 = sshll.u32 [#allocation3], 4
      %s552 = int_to_ptr.vmem [resolvable:$true] %s551
      %557 = dma.vmem_to_hbm [thread:$0]  %s552, 3840, %s3, [#allocation4], 128, 128, 8
    $region17: #{tpu_custom_call.1} parent=1 // pred_fallthru
      _
    // Predicated region
    $region18: #{tpu_custom_call.1} parent=1 // pred_check
      _
    $region19: #{tpu_custom_call.1} parent=1 // pred_check_branch
      %559 = sbr.rel (0) target = $region21
    $region20: #{tpu_custom_call.1} parent=1 // pred_region
      %560 = dma.done [#allocation4], 3840
    $region21: #{tpu_custom_call.1} parent=1 // pred_fallthru
      _
    %561 = vsyncpa [#allocation4], 1

</llo_original>
